<compile_context>
chip_gen: v5e
topology: v5e:2x2
jax: 0.10.0
libtpu: 0.0.40
codegen_flags: <defaults>
</compile_context>

<pallas_src>
import functools

import jax
import jax.numpy as jnp
from jax import lax
from jax.experimental import pallas as pl
from jax.experimental.pallas import tpu as pltpu


def _stat_kernel(x_ref, o_ref, acc_ref, *, ng, mnc, lg, tl, nt, tpp, eps,
                 masked, padded):
    """Accumulate the lane-sum of the per-element group std.

    x_ref:   (ng * mnc, tl) lane tile of the lane-dense input view.
    o_ref:   (mnc, 1) float32 partial-sum output block for this parallel part.
    acc_ref: (mnc, 128) float32 lane-wide accumulator scratch.
    """
    p = pl.program_id(0)          # parallel part
    l = pl.program_id(1)          # lane tile within the part
    t = p * tpp + l               # global lane-tile index

    @pl.when(l == 0)
    def _init():
        acc_ref[...] = jnp.zeros_like(acc_ref)

    def _accumulate(mask_tail):
        if mnc == 1:
            # Common StyleGAN2 case (M*nc == 1): group axis == sublane axis,
            # fully dense VPU reductions over axis 0.
            xb = x_ref[...].astype(jnp.float32)                  # (ng, tl)
            mu = jnp.mean(xb, axis=0, keepdims=True)             # (1, tl)
            d = xb - mu
            var = jnp.mean(d * d, axis=0, keepdims=True)         # (1, tl)
        else:
            # General case: rows ordered (g, m*nc + j); reduce over g with
            # static sublane slices (no in-kernel sublane reshape).
            slabs = [
                x_ref[g * mnc:(g + 1) * mnc, :].astype(jnp.float32)
                for g in range(ng)
            ]                                                    # ng x (mnc, tl)
            inv_ng = 1.0 / ng
            mu = sum(slabs[1:], slabs[0]) * inv_ng               # (mnc, tl)
            sq = None
            for s in slabs:
                d = s - mu
                sq = d * d if sq is None else sq + d * d
            var = sq * inv_ng                                    # (mnc, tl)

        std = jnp.sqrt(var + eps)                                # (mnc, tl)

        if mask_tail:
            # NOTE: the select must stay between sqrt and the accumulation so
            # garbage lanes of the ragged tail never reach the accumulator.
            lane = t * tl + lax.broadcasted_iota(jnp.int32, std.shape, 1)
            std = jnp.where(lane < lg, std, 0.0)

        # Fold lanes into the 128-wide accumulator: lane-aligned VALU adds.
        for c in range(tl // 128):
            acc_ref[...] += std[:, c * 128:(c + 1) * 128]
        rem = tl % 128
        if rem:
            # Only possible in the single full-width block case (tl == lg).
            tail_sum = jnp.sum(std[:, tl - rem:], axis=-1, keepdims=True)
            lane_idx = lax.broadcasted_iota(
                jnp.int32, (std.shape[0], 128), 1)
            acc_ref[...] += jnp.where(lane_idx == 0, tail_sum, 0.0)

    if masked:
        @pl.when(t == nt - 1)
        def _tail():
            _accumulate(True)

        @pl.when(t < nt - 1)
        def _full():
            _accumulate(False)
    elif padded:
        @pl.when(t < nt)
        def _full():
            _accumulate(False)
    else:
        _accumulate(False)

    @pl.when(l == tpp - 1)
    def _finalize():
        # Single cross-lane reduction + narrow store per parallel part.
        o_ref[...] = jnp.sum(acc_ref[...], axis=-1, keepdims=True)


_TARGET_BLOCK_BYTES = 4 * 1024 * 1024   # ~4 MiB input block per grid step


def minibatch_std_layer(x, group_size=16, num_channels=1, epsilon=1e-8,
                        target_block_bytes=_TARGET_BLOCK_BYTES):
    """Pallas implementation of MiniBatchSTDLayer.forward (NCHW input)."""
    if group_size <= 1:
        return x
    N, C, H, W = x.shape
    ng = min(group_size, N)
    assert N % ng == 0, "batch size must be divisible by the group size"
    nc = num_channels
    assert C % nc == 0, "channels must be divisible by num_channels"
    M = N // ng
    mnc = M * nc
    cg = C // nc
    lg = cg * H * W                       # reduction length per stat group
    rows = N * nc

    # Lane-dense view: row = (g, m, j); col = (cg, h, w). Free reshape.
    xr = x.reshape(rows, lg)

    itemsize = jnp.dtype(x.dtype).itemsize
    full_bytes = rows * lg * itemsize
    if full_bytes <= target_block_bytes or lg <= 128:
        tl = lg                           # single full-width block (legal)
    else:
        tl = (target_block_bytes // (rows * itemsize)) // 128 * 128
        tl = max(tl, 128)
        tl = min(tl, (lg // 128) * 128)
    nt = pl.cdiv(lg, tl)
    masked = (lg % tl) != 0

    # Split the lane tiles across a leading "parallel" axis (v7x megacore);
    # on single-core chips this is just a serial outer loop of length 2.
    P = 2 if nt >= 2 else 1
    tpp = pl.cdiv(nt, P)
    padded = (P * tpp) != nt

    if padded:
        # Clamp so duplicate padded steps stay in-bounds (they are skipped
        # inside the kernel via pl.when).
        in_index_map = lambda p, l: (0, jnp.minimum(p * tpp + l, nt - 1))
    else:
        in_index_map = lambda p, l: (0, p * tpp + l)

    kernel = functools.partial(
        _stat_kernel, ng=ng, mnc=mnc, lg=lg, tl=tl, nt=nt, tpp=tpp,
        eps=float(epsilon), masked=masked, padded=padded)

    block_bytes = rows * tl * itemsize
    cp_kwargs = dict(dimension_semantics=("parallel", "arbitrary"))
    vmem_needed = 2 * block_bytes + mnc * 128 * 4 + P * mnc * 4 + (1 << 20)
    if vmem_needed > 12 * 1024 * 1024:
        # Only for unusual shapes (e.g. huge batch with tiny spatial dims).
        cp_kwargs["vmem_limit_bytes"] = int(
            min(vmem_needed + (4 << 20), 48 << 20))

    partial_sums = pl.pallas_call(
        kernel,
        out_shape=jax.ShapeDtypeStruct((P * mnc, 1), jnp.float32),
        grid=(P, tpp),
        in_specs=[pl.BlockSpec((rows, tl), in_index_map)],
        out_specs=pl.BlockSpec((mnc, 1), lambda p, l: (p, 0)),
        scratch_shapes=[pltpu.VMEM((mnc, 128), jnp.float32)],
        compiler_params=pltpu.CompilerParams(**cp_kwargs),
        cost_estimate=pl.CostEstimate(
            flops=5 * N * C * H * W,
            transcendentals=mnc * lg,
            bytes_accessed=N * C * H * W * itemsize + P * mnc * 4),
    )(xr)

    # Cross-part sum + 1/lg scaling, then broadcast + concat. Pure data
    # movement -> let XLA do it as a fused HBM copy at full bandwidth.
    stat = jnp.sum(partial_sums.reshape(P, mnc, 1), axis=0) * (1.0 / lg)
    ystat = jnp.broadcast_to(
        stat.reshape(1, M, nc, 1, 1).astype(x.dtype), (ng, M, nc, H, W)
    ).reshape(N, nc, H, W)
    return jnp.concatenate([x, ystat], axis=1)


def _reference(x, group_size=16, num_channels=1, epsilon=1e-8):
    """Pure-JAX transcription of the PyTorch forward, for validation."""
    if group_size <= 1:
        return x
    N, C, H, W = x.shape
    ng = min(group_size, N)
    nc = num_channels
    y = x.reshape(ng, -1, nc, C // nc, H, W)
    y = y - jnp.mean(y, axis=0, keepdims=True)
    y = jnp.mean(y ** 2, axis=0)
    y = jnp.sqrt(y + epsilon)
    y = jnp.mean(y, axis=(2, 3, 4), keepdims=True)
    y = jnp.mean(y, axis=2)
    y = jnp.tile(y, (ng, 1, H, W))
    return jnp.concatenate([x, y], axis=1)


if __name__ == "__main__":
    key = jax.random.PRNGKey(0)
    k1, k2 = jax.random.split(key)

    # Case 1: common StyleGAN2 configuration (M*nc == 1 path, single block).
    x1 = jax.random.normal(k1, (8, 4, 16, 16), dtype=jnp.float32)
    out1 = jax.block_until_ready(
        minibatch_std_layer(x1, group_size=16, num_channels=1, epsilon=1e-8))
    ref1 = _reference(x1, group_size=16, num_channels=1, epsilon=1e-8)
    assert out1.shape == (8, 5, 16, 16)
    assert jnp.allclose(out1, ref1, atol=1e-5, rtol=1e-5), "case 1 mismatch"

    # Case 2: multiple minibatches per group and num_channels > 1.
    x2 = jax.random.normal(k2, (16, 8, 8, 8), dtype=jnp.float32)
    out2 = jax.block_until_ready(
        minibatch_std_layer(x2, group_size=4, num_channels=2, epsilon=1e-8))
    ref2 = _reference(x2, group_size=4, num_channels=2, epsilon=1e-8)
    assert out2.shape == (16, 10, 8, 8)
    assert jnp.allclose(out2, ref2, atol=1e-5, rtol=1e-5), "case 2 mismatch"

    # Case 3: force the tiled + parallel-split + padded + masked-tail path at
    # small shapes by shrinking the per-block byte target
    # (tl=384, nt=3, P=2, tpp=2 -> one skipped duplicate step + masked tail).
    out3 = jax.block_until_ready(
        minibatch_std_layer(x1, group_size=16, num_channels=1, epsilon=1e-8,
                            target_block_bytes=12 * 1024))
    assert jnp.allclose(out3, ref1, atol=1e-5, rtol=1e-5), "case 3 mismatch"

    # Case 4: mnc > 1 with an even 2-way tile split (no padding, no mask).
    out4 = jax.block_until_ready(
        minibatch_std_layer(x2, group_size=4, num_channels=2, epsilon=1e-8,
                            target_block_bytes=16 * 1024))
    assert jnp.allclose(out4, ref2, atol=1e-5, rtol=1e-5), "case 4 mismatch"

    print("KERNEL_OK")
</pallas_src>

<mosaic_0001>
module attributes {stable_mosaic.version = 11 : i64} {
  func.func @_stat_kernel(%arg0: i32, %arg1: i32, %arg2: memref<8x1024xf32, #tpu.memory_space<vmem>>, %arg3: memref<1x1xf32, #tpu.memory_space<vmem>>, %arg4: memref<1x128xf32, #tpu.memory_space<vmem>>) attributes {dimension_semantics = [#tpu.dimension_semantics<parallel>, #tpu.dimension_semantics<arbitrary>], iteration_bounds = array<i64: 1, 1>, scalar_prefetch = 0 : i64, scratch_operands = 1 : i64, tpu.core_type = #tpu.core_type<tc>, window_params = [{transform_indices = @transform_0, window_bounds = array<i64: 8, 1024>}, {transform_indices = @transform_1, window_bounds = array<i64: 1, 1>}]} {
    %c0_i32 = arith.constant 0 : i32
    %0 = arith.cmpi eq, %arg1, %c0_i32 : i32
    %1 = arith.extui %0 : i1 to i32
    %c0_i32_0 = arith.constant 0 : i32
    %2 = arith.cmpi ne, %1, %c0_i32_0 : i32
    scf.if %2 {
      %cst_40 = arith.constant 0.000000e+00 : f32
      %53 = vector.broadcast %cst_40 : f32 to vector<1x128xf32>
      %c0_41 = arith.constant 0 : index
      %c0_42 = arith.constant 0 : index
      %54 = vector.load %arg4[%c0_41, %c0_42] : memref<1x128xf32, #tpu.memory_space<vmem>>, vector<1x128xf32>
      tpu.vector_store %arg4[%c0_41, %c0_42], %53 {strides = array<i32>} : memref<1x128xf32, #tpu.memory_space<vmem>>, vector<1x128xf32>,
    } else {
    }
    %c0 = arith.constant 0 : index
    %c0_1 = arith.constant 0 : index
    %3 = vector.load %arg2[%c0, %c0_1] : memref<8x1024xf32, #tpu.memory_space<vmem>>, vector<8x1024xf32>
    %cst = arith.constant dense<0.000000e+00> : vector<1024xf32>
    %4 = vector.multi_reduction <add>, %3, %cst [0] : vector<8x1024xf32> to vector<1024xf32>
    %5 = vector.shape_cast %4 : vector<1024xf32> to vector<1x1024xf32>
    %cst_2 = arith.constant 8.000000e+00 : f32
    %6 = vector.broadcast %cst_2 : f32 to vector<1x1024xf32>
    %7 = arith.divf %5, %6 : vector<1x1024xf32>
    %8 = vector.broadcast %7 : vector<1x1024xf32> to vector<8x1024xf32>
    %9 = arith.subf %3, %8 : vector<8x1024xf32>
    %10 = arith.mulf %9, %9 : vector<8x1024xf32>
    %cst_3 = arith.constant dense<0.000000e+00> : vector<1024xf32>
    %11 = vector.multi_reduction <add>, %10, %cst_3 [0] : vector<8x1024xf32> to vector<1024xf32>
    %12 = vector.shape_cast %11 : vector<1024xf32> to vector<1x1024xf32>
    %cst_4 = arith.constant 8.000000e+00 : f32
    %13 = vector.broadcast %cst_4 : f32 to vector<1x1024xf32>
    %14 = arith.divf %12, %13 : vector<1x1024xf32>
    %cst_5 = arith.constant 9.99999993E-9 : f32
    %15 = vector.broadcast %cst_5 : f32 to vector<1x1024xf32>
    %16 = arith.addf %14, %15 : vector<1x1024xf32>
    %17 = math.sqrt %16 : vector<1x1024xf32>
    %c0_6 = arith.constant 0 : index
    %c0_7 = arith.constant 0 : index
    %18 = vector.load %arg4[%c0_6, %c0_7] : memref<1x128xf32, #tpu.memory_space<vmem>>, vector<1x128xf32>
    %19 = vector.extract_strided_slice %17 {offsets = [0, 0], sizes = [1, 128], strides = [1, 1]} : vector<1x1024xf32> to vector<1x128xf32>
    %20 = arith.addf %18, %19 : vector<1x128xf32>
    %c0_8 = arith.constant 0 : index
    %c0_9 = arith.constant 0 : index
    %21 = vector.load %arg4[%c0_8, %c0_9] : memref<1x128xf32, #tpu.memory_space<vmem>>, vector<1x128xf32>
    tpu.vector_store %arg4[%c0_8, %c0_9], %20 {strides = array<i32>} : memref<1x128xf32, #tpu.memory_space<vmem>>, vector<1x128xf32>,
    %c0_10 = arith.constant 0 : index
    %c0_11 = arith.constant 0 : index
    %22 = vector.load %arg4[%c0_10, %c0_11] : memref<1x128xf32, #tpu.memory_space<vmem>>, vector<1x128xf32>
    %23 = vector.extract_strided_slice %17 {offsets = [0, 128], sizes = [1, 128], strides = [1, 1]} : vector<1x1024xf32> to vector<1x128xf32>
    %24 = arith.addf %22, %23 : vector<1x128xf32>
    %c0_12 = arith.constant 0 : index
    %c0_13 = arith.constant 0 : index
    %25 = vector.load %arg4[%c0_12, %c0_13] : memref<1x128xf32, #tpu.memory_space<vmem>>, vector<1x128xf32>
    tpu.vector_store %arg4[%c0_12, %c0_13], %24 {strides = array<i32>} : memref<1x128xf32, #tpu.memory_space<vmem>>, vector<1x128xf32>,
    %c0_14 = arith.constant 0 : index
    %c0_15 = arith.constant 0 : index
    %26 = vector.load %arg4[%c0_14, %c0_15] : memref<1x128xf32, #tpu.memory_space<vmem>>, vector<1x128xf32>
    %27 = vector.extract_strided_slice %17 {offsets = [0, 256], sizes = [1, 128], strides = [1, 1]} : vector<1x1024xf32> to vector<1x128xf32>
    %28 = arith.addf %26, %27 : vector<1x128xf32>
    %c0_16 = arith.constant 0 : index
    %c0_17 = arith.constant 0 : index
    %29 = vector.load %arg4[%c0_16, %c0_17] : memref<1x128xf32, #tpu.memory_space<vmem>>, vector<1x128xf32>
    tpu.vector_store %arg4[%c0_16, %c0_17], %28 {strides = array<i32>} : memref<1x128xf32, #tpu.memory_space<vmem>>, vector<1x128xf32>,
    %c0_18 = arith.constant 0 : index
    %c0_19 = arith.constant 0 : index
    %30 = vector.load %arg4[%c0_18, %c0_19] : memref<1x128xf32, #tpu.memory_space<vmem>>, vector<1x128xf32>
    %31 = vector.extract_strided_slice %17 {offsets = [0, 384], sizes = [1, 128], strides = [1, 1]} : vector<1x1024xf32> to vector<1x128xf32>
    %32 = arith.addf %30, %31 : vector<1x128xf32>
    %c0_20 = arith.constant 0 : index
    %c0_21 = arith.constant 0 : index
    %33 = vector.load %arg4[%c0_20, %c0_21] : memref<1x128xf32, #tpu.memory_space<vmem>>, vector<1x128xf32>
    tpu.vector_store %arg4[%c0_20, %c0_21], %32 {strides = array<i32>} : memref<1x128xf32, #tpu.memory_space<vmem>>, vector<1x128xf32>,
    %c0_22 = arith.constant 0 : index
    %c0_23 = arith.constant 0 : index
    %34 = vector.load %arg4[%c0_22, %c0_23] : memref<1x128xf32, #tpu.memory_space<vmem>>, vector<1x128xf32>
    %35 = vector.extract_strided_slice %17 {offsets = [0, 512], sizes = [1, 128], strides = [1, 1]} : vector<1x1024xf32> to vector<1x128xf32>
    %36 = arith.addf %34, %35 : vector<1x128xf32>
    %c0_24 = arith.constant 0 : index
    %c0_25 = arith.constant 0 : index
    %37 = vector.load %arg4[%c0_24, %c0_25] : memref<1x128xf32, #tpu.memory_space<vmem>>, vector<1x128xf32>
    tpu.vector_store %arg4[%c0_24, %c0_25], %36 {strides = array<i32>} : memref<1x128xf32, #tpu.memory_space<vmem>>, vector<1x128xf32>,
    %c0_26 = arith.constant 0 : index
    %c0_27 = arith.constant 0 : index
    %38 = vector.load %arg4[%c0_26, %c0_27] : memref<1x128xf32, #tpu.memory_space<vmem>>, vector<1x128xf32>
    %39 = vector.extract_strided_slice %17 {offsets = [0, 640], sizes = [1, 128], strides = [1, 1]} : vector<1x1024xf32> to vector<1x128xf32>
    %40 = arith.addf %38, %39 : vector<1x128xf32>
    %c0_28 = arith.constant 0 : index
    %c0_29 = arith.constant 0 : index
    %41 = vector.load %arg4[%c0_28, %c0_29] : memref<1x128xf32, #tpu.memory_space<vmem>>, vector<1x128xf32>
    tpu.vector_store %arg4[%c0_28, %c0_29], %40 {strides = array<i32>} : memref<1x128xf32, #tpu.memory_space<vmem>>, vector<1x128xf32>,
    %c0_30 = arith.constant 0 : index
    %c0_31 = arith.constant 0 : index
    %42 = vector.load %arg4[%c0_30, %c0_31] : memref<1x128xf32, #tpu.memory_space<vmem>>, vector<1x128xf32>
    %43 = vector.extract_strided_slice %17 {offsets = [0, 768], sizes = [1, 128], strides = [1, 1]} : vector<1x1024xf32> to vector<1x128xf32>
    %44 = arith.addf %42, %43 : vector<1x128xf32>
    %c0_32 = arith.constant 0 : index
    %c0_33 = arith.constant 0 : index
    %45 = vector.load %arg4[%c0_32, %c0_33] : memref<1x128xf32, #tpu.memory_space<vmem>>, vector<1x128xf32>
    tpu.vector_store %arg4[%c0_32, %c0_33], %44 {strides = array<i32>} : memref<1x128xf32, #tpu.memory_space<vmem>>, vector<1x128xf32>,
    %c0_34 = arith.constant 0 : index
    %c0_35 = arith.constant 0 : index
    %46 = vector.load %arg4[%c0_34, %c0_35] : memref<1x128xf32, #tpu.memory_space<vmem>>, vector<1x128xf32>
    %47 = vector.extract_strided_slice %17 {offsets = [0, 896], sizes = [1, 128], strides = [1, 1]} : vector<1x1024xf32> to vector<1x128xf32>
    %48 = arith.addf %46, %47 : vector<1x128xf32>
    %c0_36 = arith.constant 0 : index
    %c0_37 = arith.constant 0 : index
    %49 = vector.load %arg4[%c0_36, %c0_37] : memref<1x128xf32, #tpu.memory_space<vmem>>, vector<1x128xf32>
    tpu.vector_store %arg4[%c0_36, %c0_37], %48 {strides = array<i32>} : memref<1x128xf32, #tpu.memory_space<vmem>>, vector<1x128xf32>,
    %c0_i32_38 = arith.constant 0 : i32
    %50 = arith.cmpi eq, %arg1, %c0_i32_38 : i32
    %51 = arith.extui %50 : i1 to i32
    %c0_i32_39 = arith.constant 0 : i32
    %52 = arith.cmpi ne, %51, %c0_i32_39 : i32
    scf.if %52 {
      %c0_40 = arith.constant 0 : index
      %c0_41 = arith.constant 0 : index
      %53 = vector.load %arg4[%c0_40, %c0_41] : memref<1x128xf32, #tpu.memory_space<vmem>>, vector<1x128xf32>
      %cst_42 = arith.constant dense<0.000000e+00> : vector<1xf32>
      %54 = vector.multi_reduction <add>, %53, %cst_42 [1] : vector<1x128xf32> to vector<1xf32>
      %55 = vector.shape_cast %54 : vector<1xf32> to vector<1x1xf32>
      %c0_43 = arith.constant 0 : index
      %c0_44 = arith.constant 0 : index
      %56 = vector.load %arg3[%c0_43, %c0_44] : memref<1x1xf32, #tpu.memory_space<vmem>>, vector<1x1xf32>
      tpu.vector_store %arg3[%c0_43, %c0_44], %55 {strides = array<i32>} : memref<1x1xf32, #tpu.memory_space<vmem>>, vector<1x1xf32>,
    } else {
    }
    return
  }
  func.func @transform_0(%arg0: i32, %arg1: i32) -> (i32, i32) {
    %c1_i32 = arith.constant 1 : i32
    %0 = arith.muli %arg0, %c1_i32 : i32
    %1 = arith.addi %0, %arg1 : i32
    %c0_i32 = arith.constant 0 : i32
    %c0_i32_0 = arith.constant 0 : i32
    return %c0_i32, %1 : i32, i32
  }
  func.func @transform_1(%arg0: i32, %arg1: i32) -> (i32, i32) {
    %c0_i32 = arith.constant 0 : i32
    %c0_i32_0 = arith.constant 0 : i32
    return %arg0, %c0_i32 : i32, i32
  }
}

</mosaic_0001>

<llo_original>
// kernel: tpu_custom_call.1
$region0: #{tpu_custom_call.1}
  #allocation0 [shape = 'u32[]', space=smem, size = 0x4, offset = 0x4, fixed_abs, tag = 'smem constant byte address 0x4 - core index']
  #allocation1 [shape = 'u32[72,128]{1,0:T(1,128)}', space=vmem, size = 0x9000, scoped, tag = 'internal scratch']
  #allocation2 [shape = 'f32[1,128]{1,0:T(1,128)}', space=vmem, size = 0x200, scoped, tag = 'scratch operand']
  %s0 = inlined_call_operand.hbm [shape: f32[8,1024], index: 0, kind: input, shape index: {}]
  %s1 = inlined_call_operand.hbm [shape: f32[1,1], index: 1, kind: output, shape index: {}]
  %s2 = sld [smem:[#allocation0]]
  $region26: #{tpu_custom_call.1} parent=0
    _
  %s4 = ssub.s32 1, %s2
  %s5 = scalar_select 0, %s4, %s2
  $region1: #{tpu_custom_call.1} parent=0
    #allocation3 [shape = 'u8[32768]{0}', space=vmem, size = 0x8000, scoped, tag = 'input window, operand 0, single buffered']
    #allocation4 [shape = 's32[1]{0}', space=sflag, size = 0x4, scoped, tag = 'scoped memory for tpu_custom_call.1']
    #allocation5 [shape = 's32[1]{0}', space=sflag, size = 0x4, scoped, tag = 'scoped memory for tpu_custom_call.1']
    #allocation6 [shape = 'u8[512]{0}', space=vmem, size = 0x400, scoped, tag = 'output window, operand 0, single buffered']
    %6 = vsyncpa [#allocation4], 0
    %7 = vsyncpa [#allocation5], 0
    // Predicated region
    $region2: #{tpu_custom_call.1} parent=1 // pred_check
      _
    $region3: #{tpu_custom_call.1} parent=1 // pred_check_branch
      %9 = sbr.rel (0) target = $region5
    $region4: #{tpu_custom_call.1} parent=1 // pred_region
      %s10 = sadd.s32 0, 0
      %s11 = smul.u32 8, %s10
      %13 = vsyncadd [#allocation4], 0
      %s14 = smul.addr %s11, 8
      %s15 = scalar_lea.hbm %s0, %s14
      %s17 = sshll.u32 %s15, 4
      %s18 = int_to_ptr.hbm [resolvable:$true] %s17
      %s19 = sshll.u32 [#allocation3], 4
      %s20 = int_to_ptr.vmem [resolvable:$true] %s19
      %22 = dma.hbm_to_vmem [thread:$0]  %s18, 1024, %s20, [#allocation4]
    $region5: #{tpu_custom_call.1} parent=1 // pred_fallthru
      _
    // Predicated region
    $region6: #{tpu_custom_call.1} parent=1 // pred_check
      _
    $region7: #{tpu_custom_call.1} parent=1 // pred_check_branch
      %24 = sbr.rel (0) target = $region9
    $region8: #{tpu_custom_call.1} parent=1 // pred_region
      %26 = dma.done [#allocation4], 1024
    $region9: #{tpu_custom_call.1} parent=1 // pred_fallthru
      _
    %s27 = sadd.s32 0, 0
    %s28 = smul.u32 8, %s27
    %p29 = scmp.eq.s32.totalorder 0, 0
    // Predicated region
    $region10: #{tpu_custom_call.1} parent=1 // pred_check
      %p30 = pneg %p29
    $region11: #{tpu_custom_call.1} parent=1 // pred_check_branch
      %32 = sbr.rel (%p30) target = $region13
    $region12: #{tpu_custom_call.1} parent=1 // pred_region
      %33 = vst [vmem:[#allocation2] sm:$0x1] 0.0
    $region13: #{tpu_custom_call.1} parent=1 // pred_fallthru
      _
    %v34 = vld [vmem:[#allocation3] sm:$0xff]
    %v35 = vld [vmem:[#allocation3 + $0x8] sm:$0xff]
    %v36 = vld [vmem:[#allocation3 + $0x10] sm:$0xff]
    %v37 = vld [vmem:[#allocation3 + $0x18] sm:$0xff]
    %v38 = vld [vmem:[#allocation3 + $0x20] sm:$0xff]
    %v39 = vld [vmem:[#allocation3 + $0x28] sm:$0xff]
    %v40 = vld [vmem:[#allocation3 + $0x30] sm:$0xff]
    %v41 = vld [vmem:[#allocation3 + $0x38] sm:$0xff]
    %v42 = vrot.slane %v34, 4
    %v43 = vadd.f32 %v34, %v42
    %v44 = vrot.slane %v43, 2
    %v45 = vadd.f32 %v43, %v44
    %v46 = vrot.slane %v45, 1
    %v47 = vadd.f32 %v45, %v46
    %v48 = vrot.slane %v35, 4
    %v49 = vadd.f32 %v35, %v48
    %v50 = vrot.slane %v49, 2
    %v51 = vadd.f32 %v49, %v50
    %v52 = vrot.slane %v51, 1
    %v53 = vadd.f32 %v51, %v52
    %v54 = vrot.slane %v36, 4
    %v55 = vadd.f32 %v36, %v54
    %v56 = vrot.slane %v55, 2
    %v57 = vadd.f32 %v55, %v56
    %v58 = vrot.slane %v57, 1
    %v59 = vadd.f32 %v57, %v58
    %v60 = vrot.slane %v37, 4
    %v61 = vadd.f32 %v37, %v60
    %v62 = vrot.slane %v61, 2
    %v63 = vadd.f32 %v61, %v62
    %v64 = vrot.slane %v63, 1
    %v65 = vadd.f32 %v63, %v64
    %v66 = vrot.slane %v38, 4
    %v67 = vadd.f32 %v38, %v66
    %v68 = vrot.slane %v67, 2
    %v69 = vadd.f32 %v67, %v68
    %v70 = vrot.slane %v69, 1
    %v71 = vadd.f32 %v69, %v70
    %v72 = vrot.slane %v39, 4
    %v73 = vadd.f32 %v39, %v72
    %v74 = vrot.slane %v73, 2
    %v75 = vadd.f32 %v73, %v74
    %v76 = vrot.slane %v75, 1
    %v77 = vadd.f32 %v75, %v76
    %v78 = vrot.slane %v40, 4
    %v79 = vadd.f32 %v40, %v78
    %v80 = vrot.slane %v79, 2
    %v81 = vadd.f32 %v79, %v80
    %v82 = vrot.slane %v81, 1
    %v83 = vadd.f32 %v81, %v82
    %v84 = vrot.slane %v41, 4
    %v85 = vadd.f32 %v41, %v84
    %v86 = vrot.slane %v85, 2
    %v87 = vadd.f32 %v85, %v86
    %v88 = vrot.slane %v87, 1
    %v89 = vadd.f32 %v87, %v88
    %v90 = vrcp.pop 8.0
    %v91 = vmul.f32 8.0, %v90
    %v92 = vsub.f32 1.0, %v91
    %v93 = vmul.f32 %v90, %v92
    %v94 = vadd.f32 %v90, %v93
    %vm95 = vweird.f32 %v90
    %v96 = vsel %vm95, %v90, %v94
    %v97 = vmul.f32 %v47, %v96
    %v98 = vmul.f32 %v53, %v96
    %v99 = vmul.f32 %v59, %v96
    %v100 = vmul.f32 %v65, %v96
    %v101 = vmul.f32 %v71, %v96
    %v102 = vmul.f32 %v77, %v96
    %v103 = vmul.f32 %v83, %v96
    %v104 = vmul.f32 %v89, %v96
    %v105 = vsub.f32 %v34, %v97
    %v106 = vsub.f32 %v35, %v98
    %v107 = vsub.f32 %v36, %v99
    %v108 = vsub.f32 %v37, %v100
    %v109 = vsub.f32 %v38, %v101
    %v110 = vsub.f32 %v39, %v102
    %v111 = vsub.f32 %v40, %v103
    %v112 = vsub.f32 %v41, %v104
    %v113 = vmul.f32 %v105, %v105
    %v114 = vmul.f32 %v106, %v106
    %v115 = vmul.f32 %v107, %v107
    %v116 = vmul.f32 %v108, %v108
    %v117 = vmul.f32 %v109, %v109
    %v118 = vmul.f32 %v110, %v110
    %v119 = vmul.f32 %v111, %v111
    %v120 = vmul.f32 %v112, %v112
    %v121 = vrot.slane %v113, 4
    %v122 = vadd.f32 %v113, %v121
    %v123 = vrot.slane %v122, 2
    %v124 = vadd.f32 %v122, %v123
    %v125 = vrot.slane %v124, 1
    %v126 = vadd.f32 %v124, %v125
    %v127 = vrot.slane %v114, 4
    %v128 = vadd.f32 %v114, %v127
    %v129 = vrot.slane %v128, 2
    %v130 = vadd.f32 %v128, %v129
    %v131 = vrot.slane %v130, 1
    %v132 = vadd.f32 %v130, %v131
    %v133 = vrot.slane %v115, 4
    %v134 = vadd.f32 %v115, %v133
    %v135 = vrot.slane %v134, 2
    %v136 = vadd.f32 %v134, %v135
    %v137 = vrot.slane %v136, 1
    %v138 = vadd.f32 %v136, %v137
    %v139 = vrot.slane %v116, 4
    %v140 = vadd.f32 %v116, %v139
    %v141 = vrot.slane %v140, 2
    %v142 = vadd.f32 %v140, %v141
    %v143 = vrot.slane %v142, 1
    %v144 = vadd.f32 %v142, %v143
    %v145 = vrot.slane %v117, 4
    %v146 = vadd.f32 %v117, %v145
    %v147 = vrot.slane %v146, 2
    %v148 = vadd.f32 %v146, %v147
    %v149 = vrot.slane %v148, 1
    %v150 = vadd.f32 %v148, %v149
    %v151 = vrot.slane %v118, 4
    %v152 = vadd.f32 %v118, %v151
    %v153 = vrot.slane %v152, 2
    %v154 = vadd.f32 %v152, %v153
    %v155 = vrot.slane %v154, 1
    %v156 = vadd.f32 %v154, %v155
    %v157 = vrot.slane %v119, 4
    %v158 = vadd.f32 %v119, %v157
    %v159 = vrot.slane %v158, 2
    %v160 = vadd.f32 %v158, %v159
    %v161 = vrot.slane %v160, 1
    %v162 = vadd.f32 %v160, %v161
    %v163 = vrot.slane %v120, 4
    %v164 = vadd.f32 %v120, %v163
    %v165 = vrot.slane %v164, 2
    %v166 = vadd.f32 %v164, %v165
    %v167 = vrot.slane %v166, 1
    %v168 = vadd.f32 %v166, %v167
    %v169 = vmul.f32 %v126, %v96
    %v170 = vmul.f32 %v132, %v96
    %v171 = vmul.f32 %v138, %v96
    %v172 = vmul.f32 %v144, %v96
    %v173 = vmul.f32 %v150, %v96
    %v174 = vmul.f32 %v156, %v96
    %v175 = vmul.f32 %v162, %v96
    %v176 = vmul.f32 %v168, %v96
    %v177 = vadd.f32 %v169, 1e-08
    %v178 = vadd.f32 %v170, 1e-08
    %v179 = vadd.f32 %v171, 1e-08
    %v180 = vadd.f32 %v172, 1e-08
    %v181 = vadd.f32 %v173, 1e-08
    %v182 = vadd.f32 %v174, 1e-08
    %v183 = vadd.f32 %v175, 1e-08
    %v184 = vadd.f32 %v176, 1e-08
    %v185 = vrsqrt.pop %v177
    %v186 = vmul.f32 %v185, %v177
    %v187 = vmul.f32 %v186, %v185
    %v188 = vmul.f32 0.5, %v187
    %v189 = vsub.f32 1.5, %v188
    %v190 = vmul.f32 %v185, %v189
    %v191 = vmul.f32 %v177, %v190
    %vm192 = vcmp.eq.f32.partialorder %v177, inf
    %v193 = vsel %vm192, %v177, %v191
    %vm194 = vcmp.eq.f32.partialorder %v177, 0.0
    %v195 = vand.u32 %v177, 2147483648
    %v196 = vsel %vm194, %v195, %v193
    %v197 = vrsqrt.pop %v178
    %v198 = vmul.f32 %v197, %v178
    %v199 = vmul.f32 %v198, %v197
    %v200 = vmul.f32 0.5, %v199
    %v201 = vsub.f32 1.5, %v200
    %v202 = vmul.f32 %v197, %v201
    %v203 = vmul.f32 %v178, %v202
    %vm204 = vcmp.eq.f32.partialorder %v178, inf
    %v205 = vsel %vm204, %v178, %v203
    %vm206 = vcmp.eq.f32.partialorder %v178, 0.0
    %v207 = vand.u32 %v178, 2147483648
    %v208 = vsel %vm206, %v207, %v205
    %v209 = vrsqrt.pop %v179
    %v210 = vmul.f32 %v209, %v179
    %v211 = vmul.f32 %v210, %v209
    %v212 = vmul.f32 0.5, %v211
    %v213 = vsub.f32 1.5, %v212
    %v214 = vmul.f32 %v209, %v213
    %v215 = vmul.f32 %v179, %v214
    %vm216 = vcmp.eq.f32.partialorder %v179, inf
    %v217 = vsel %vm216, %v179, %v215
    %vm218 = vcmp.eq.f32.partialorder %v179, 0.0
    %v219 = vand.u32 %v179, 2147483648
    %v220 = vsel %vm218, %v219, %v217
    %v221 = vrsqrt.pop %v180
    %v222 = vmul.f32 %v221, %v180
    %v223 = vmul.f32 %v222, %v221
    %v224 = vmul.f32 0.5, %v223
    %v225 = vsub.f32 1.5, %v224
    %v226 = vmul.f32 %v221, %v225
    %v227 = vmul.f32 %v180, %v226
    %vm228 = vcmp.eq.f32.partialorder %v180, inf
    %v229 = vsel %vm228, %v180, %v227
    %vm230 = vcmp.eq.f32.partialorder %v180, 0.0
    %v231 = vand.u32 %v180, 2147483648
    %v232 = vsel %vm230, %v231, %v229
    %v233 = vrsqrt.pop %v181
    %v234 = vmul.f32 %v233, %v181
    %v235 = vmul.f32 %v234, %v233
    %v236 = vmul.f32 0.5, %v235
    %v237 = vsub.f32 1.5, %v236
    %v238 = vmul.f32 %v233, %v237
    %v239 = vmul.f32 %v181, %v238
    %vm240 = vcmp.eq.f32.partialorder %v181, inf
    %v241 = vsel %vm240, %v181, %v239
    %vm242 = vcmp.eq.f32.partialorder %v181, 0.0
    %v243 = vand.u32 %v181, 2147483648
    %v244 = vsel %vm242, %v243, %v241
    %v245 = vrsqrt.pop %v182
    %v246 = vmul.f32 %v245, %v182
    %v247 = vmul.f32 %v246, %v245
    %v248 = vmul.f32 0.5, %v247
    %v249 = vsub.f32 1.5, %v248
    %v250 = vmul.f32 %v245, %v249
    %v251 = vmul.f32 %v182, %v250
    %vm252 = vcmp.eq.f32.partialorder %v182, inf
    %v253 = vsel %vm252, %v182, %v251
    %vm254 = vcmp.eq.f32.partialorder %v182, 0.0
    %v255 = vand.u32 %v182, 2147483648
    %v256 = vsel %vm254, %v255, %v253
    %v257 = vrsqrt.pop %v183
    %v258 = vmul.f32 %v257, %v183
    %v259 = vmul.f32 %v258, %v257
    %v260 = vmul.f32 0.5, %v259
    %v261 = vsub.f32 1.5, %v260
    %v262 = vmul.f32 %v257, %v261
    %v263 = vmul.f32 %v183, %v262
    %vm264 = vcmp.eq.f32.partialorder %v183, inf
    %v265 = vsel %vm264, %v183, %v263
    %vm266 = vcmp.eq.f32.partialorder %v183, 0.0
    %v267 = vand.u32 %v183, 2147483648
    %v268 = vsel %vm266, %v267, %v265
    %v269 = vrsqrt.pop %v184
    %v270 = vmul.f32 %v269, %v184
    %v271 = vmul.f32 %v270, %v269
    %v272 = vmul.f32 0.5, %v271
    %v273 = vsub.f32 1.5, %v272
    %v274 = vmul.f32 %v269, %v273
    %v275 = vmul.f32 %v184, %v274
    %vm276 = vcmp.eq.f32.partialorder %v184, inf
    %v277 = vsel %vm276, %v184, %v275
    %vm278 = vcmp.eq.f32.partialorder %v184, 0.0
    %v279 = vand.u32 %v184, 2147483648
    %v280 = vsel %vm278, %v279, %v277
    %v281 = vld [vmem:[#allocation2] sm:$0x1]
    %v282 = vadd.f32 %v281, %v196
    %283 = vst [vmem:[#allocation2] sm:$0x1] %v282
    %v284 = vld [vmem:[#allocation2] sm:$0x1]
    %v285 = vadd.f32 %v284, %v208
    %286 = vst [vmem:[#allocation2] sm:$0x1] %v285
    %v287 = vld [vmem:[#allocation2] sm:$0x1]
    %v288 = vadd.f32 %v287, %v220
    %289 = vst [vmem:[#allocation2] sm:$0x1] %v288
    %v290 = vld [vmem:[#allocation2] sm:$0x1]
    %v291 = vadd.f32 %v290, %v232
    %292 = vst [vmem:[#allocation2] sm:$0x1] %v291
    %v293 = vld [vmem:[#allocation2] sm:$0x1]
    %v294 = vadd.f32 %v293, %v244
    %295 = vst [vmem:[#allocation2] sm:$0x1] %v294
    %v296 = vld [vmem:[#allocation2] sm:$0x1]
    %v297 = vadd.f32 %v296, %v256
    %298 = vst [vmem:[#allocation2] sm:$0x1] %v297
    %v299 = vld [vmem:[#allocation2] sm:$0x1]
    %v300 = vadd.f32 %v299, %v268
    %301 = vst [vmem:[#allocation2] sm:$0x1] %v300
    %v302 = vld [vmem:[#allocation2] sm:$0x1]
    %v303 = vadd.f32 %v302, %v280
    %304 = vst [vmem:[#allocation2] sm:$0x1] %v303
    // Predicated region
    $region14: #{tpu_custom_call.1} parent=1 // pred_check
      %p305 = pneg %p29
    $region15: #{tpu_custom_call.1} parent=1 // pred_check_branch
      %307 = sbr.rel (%p305) target = $region17
    $region16: #{tpu_custom_call.1} parent=1 // pred_region
      %v308 = vld [vmem:[#allocation2] sm:$0x1]
      %vm309 = vcmask 1040384
      %v310 = vsel %vm309, %v308, 0.0
      %311 = vadd.xlane.f32.xlu0 %v310
      %v312 = vpop.xlane.xlu0 %311
      %vm313 = vcmask 0
      %314 = vst.msk [vmem:[#allocation6] sm:$0x1] %vm313, %v312
    $region17: #{tpu_custom_call.1} parent=1 // pred_fallthru
      _
    // Predicated region
    $region18: #{tpu_custom_call.1} parent=1 // pred_check
      _
    $region19: #{tpu_custom_call.1} parent=1 // pred_check_branch
      %316 = sbr.rel (0) target = $region21
    $region20: #{tpu_custom_call.1} parent=1 // pred_region
      %318 = vsyncadd [#allocation5], 0
      %s320 = sshll.u32 [#allocation6], 4
      %s321 = int_to_ptr.vmem [resolvable:$true] %s320
      %s322 = sshll.u32 %s1, 4
      %s323 = int_to_ptr.hbm [resolvable:$true] %s322
      %325 = dma.vmem_to_hbm [thread:$0]  %s321, 16, %s323, [#allocation5]
    $region21: #{tpu_custom_call.1} parent=1 // pred_fallthru
      _
    // Predicated region
    $region22: #{tpu_custom_call.1} parent=1 // pred_check
      _
    $region23: #{tpu_custom_call.1} parent=1 // pred_check_branch
      %327 = sbr.rel (0) target = $region25
    $region24: #{tpu_custom_call.1} parent=1 // pred_region
      %329 = dma.done [#allocation5], 16
    $region25: #{tpu_custom_call.1} parent=1 // pred_fallthru
      _
    %330 = vsyncpa [#allocation4], 1
    %331 = vsyncpa [#allocation5], 1

</llo_original>
